<compile_context>
chip_gen: v7x
topology: tpu7x:2x2x1
jax: 0.10.0
libtpu: 0.0.40
codegen_flags: <defaults>
</compile_context>

<pallas_src>
import functools

import jax
import jax.numpy as jnp
from jax import lax
from jax.experimental import pallas as pl
from jax.experimental.pallas import tpu as pltpu


# ------------------------------ helpers --------------------------------------


def _round_up(x, m):
    return ((x + m - 1) // m) * m


def _sublane_align(dtype):
    itemsize = jnp.dtype(dtype).itemsize
    return {4: 8, 2: 16, 1: 32}.get(itemsize, 8)


def _pick_tile(dim, cap, align, floor):
    """Tile picker: the full (aligned) extent if it fits under `cap`, otherwise
    the largest power-of-two multiple of `align` in [floor, cap] whose
    zero-padding waste is <= 12.5% of the padded extent (fall back to floor)."""
    cap = max(align, (cap // align) * align)
    dim_al = _round_up(dim, align)
    if dim_al <= cap:
        return dim_al
    floor = max(align, min(floor, cap))
    best = floor
    t = floor
    while t <= cap:
        padded = _round_up(dim, t)
        if (padded - dim) * 8 <= padded:
            best = t
        t *= 2
    return best


def _pick_tk(K, cap):
    """Reduction tile: exact divisor of K (multiple of 128) when possible so xi
    needs no K padding; otherwise a waste-aware 128-aligned tile."""
    cap = max(128, (cap // 128) * 128)
    if K % 128 == 0:
        best = 128
        t = 128
        while t <= min(K, cap):
            if K % t == 0:
                best = t
            t += 128
        return best
    return _pick_tile(K, cap, 128, 256)


def _tpu_generation_info():
    """(vmem_capacity_bytes, tensorcores_per_chip) with conservative fallbacks."""
    vmem_bytes = None
    num_cores = 1
    try:
        info = pltpu.get_tpu_info()
        vmem_bytes = getattr(info, "vmem_capacity_bytes", None)
        for attr in ("num_cores", "tensorcore_count", "num_tensorcores",
                     "cores_per_chip"):
            v = getattr(info, attr, None)
            if isinstance(v, int) and v > 0:
                num_cores = v
                break
    except Exception:
        pass
    if not isinstance(vmem_bytes, int) or vmem_bytes <= 0:
        vmem_bytes = 64 * 1024 * 1024  # assume v7x-class VMEM (most restrictive)
    return vmem_bytes, num_cores


# ------------------------------ kernels ---------------------------------------


def _linear_kernel_single_k(x_ref, w_ref, o_ref, *, compute_dtype):
    x = x_ref[...]
    w = w_ref[...]
    if compute_dtype is not None:
        x = x.astype(compute_dtype)
        w = w.astype(compute_dtype)
    o_ref[...] = jnp.dot(x, w, preferred_element_type=jnp.float32).astype(o_ref.dtype)


def _linear_kernel_multi_k(x_ref, w_ref, o_ref, acc_ref, *, compute_dtype):
    @pl.when(pl.program_id(2) == 0)
    def _():
        acc_ref[...] = jnp.zeros_like(acc_ref)

    x = x_ref[...]
    w = w_ref[...]
    if compute_dtype is not None:
        x = x.astype(compute_dtype)
        w = w.astype(compute_dtype)
    acc_ref[...] += jnp.dot(x, w, preferred_element_type=jnp.float32)

    @pl.when(pl.program_id(2) == pl.num_programs(2) - 1)
    def _():
        o_ref[...] = acc_ref[...].astype(o_ref.dtype)


# ------------------------------ module ----------------------------------------


class WangSinkhornPallas:
    """Pallas port of WangSinkhorn.forward: y = xi @ W.T (bias-free Linear).

    weight: (output_dim, input_dim) torch nn.Linear layout.
    The weight is pre-transposed / pre-padded / (optionally) pre-cast once at
    construction time; __call__ runs the tiled Pallas matmul.
    """

    def __init__(self, weight, *, compute_dtype=None,
                 tb_cap=None, tn_cap=None, tk_cap=None):
        weight = jnp.asarray(weight)
        N, K = weight.shape
        self.output_dim = N
        self.input_dim = K
        self.compute_dtype = compute_dtype

        # --- generation-aware VMEM budget ------------------------------------
        vmem_bytes, num_cores = _tpu_generation_info()
        if vmem_bytes >= 100 * 1024 * 1024:          # v5e / v6e: 128 MiB physical
            self.vmem_limit = 96 * 1024 * 1024
            budget = 56 * 1024 * 1024
            default_tk_cap = 2048
        else:                                        # v7x (64 MiB) or unknown
            self.vmem_limit = 48 * 1024 * 1024
            budget = 28 * 1024 * 1024
            default_tk_cap = 1024
        self.num_cores = max(1, num_cores)

        tb_cap = 512 if tb_cap is None else tb_cap
        tn_cap = 512 if tn_cap is None else tn_cap
        tk_cap = default_tk_cap if tk_cap is None else tk_cap

        tn = _pick_tile(N, tn_cap, 128, 128)
        tk = _pick_tk(K, tk_cap)

        # --- safety shrink against the VMEM budget (tb assumed at its cap) ---
        w_dtype = compute_dtype if compute_dtype is not None else weight.dtype
        w_itemsize = jnp.dtype(w_dtype).itemsize

        def footprint(tb_, tn_, tk_):
            f = 2 * tb_ * tk_ * 4            # xi tiles (assume f32), double-buffered
            f += 2 * tk_ * tn_ * w_itemsize  # W tiles, double-buffered
            f += 2 * tb_ * tn_ * 4           # output tiles, double-buffered
            f += tb_ * tn_ * 4               # f32 accumulator (multi-K case)
            return f

        while footprint(tb_cap, tn, tk) > budget:
            if tn > 256:
                tn = max(256, _round_up(tn // 2, 128))
            elif tb_cap > 128:
                tb_cap = max(128, _round_up(tb_cap // 2, 8))
            elif tk > 256:
                tk = max(256, _round_up(tk // 2, 128))
            else:
                break

        self._tb_cap = tb_cap
        self.tn = tn
        self.tk = tk

        # --- one-time weight prep: transpose to (K, N), pad, cast ------------
        self.K_pad = _round_up(K, tk)
        self.N_pad = _round_up(N, tn)
        w_kn = weight.T                                        # (K, N)
        if (self.K_pad, self.N_pad) != (K, N):
            w_kn = jnp.pad(w_kn, ((0, self.K_pad - K), (0, self.N_pad - N)))
        if compute_dtype is not None:
            w_kn = w_kn.astype(compute_dtype)
        self.w_kn = w_kn

    def __call__(self, xi):
        B, K = xi.shape
        assert K == self.input_dim, "input_dim mismatch between xi and weight"
        tn, tk = self.tn, self.tk

        # Batch tile: full aligned extent if it fits, else waste-aware tile.
        tb = _pick_tile(B, self._tb_cap, _sublane_align(xi.dtype), 64)

        B_pad = _round_up(B, tb)
        x_p = xi
        if (B_pad, self.K_pad) != (B, K):
            x_p = jnp.pad(xi, ((0, B_pad - B), (0, self.K_pad - K)))

        grid_m = B_pad // tb
        grid_k = self.K_pad // tk

        # v7x-only: if there are fewer parallel blocks than TensorCores, split
        # along N (never B) so both cores get work. No-op on single-TC chips.
        if self.num_cores > 1:
            while (grid_m * (self.N_pad // tn) < self.num_cores
                   and tn >= 256 and tn % 256 == 0):
                tn //= 2
        grid_n = self.N_pad // tn

        multi_k = grid_k > 1
        if multi_k:
            kernel = functools.partial(_linear_kernel_multi_k,
                                       compute_dtype=self.compute_dtype)
            scratch = [pltpu.VMEM((tb, tn), jnp.float32)]
        else:
            kernel = functools.partial(_linear_kernel_single_k,
                                       compute_dtype=self.compute_dtype)
            scratch = []

        x_bytes = B_pad * self.K_pad * jnp.dtype(x_p.dtype).itemsize
        w_bytes = self.K_pad * self.N_pad * jnp.dtype(self.w_kn.dtype).itemsize
        o_bytes = B_pad * self.N_pad * jnp.dtype(xi.dtype).itemsize
        cost = pl.CostEstimate(
            flops=2 * B_pad * self.N_pad * self.K_pad,
            transcendentals=0,
            bytes_accessed=x_bytes * grid_n + w_bytes * grid_m + o_bytes,
        )

        out_padded = pl.pallas_call(
            kernel,
            out_shape=jax.ShapeDtypeStruct((B_pad, self.N_pad), xi.dtype),
            grid_spec=pltpu.PrefetchScalarGridSpec(
                num_scalar_prefetch=0,
                grid=(grid_m, grid_n, grid_k),
                in_specs=[
                    # xi tile: (tb, tk) at block (i, k)
                    pl.BlockSpec((tb, tk), lambda i, j, k: (i, k)),
                    # pre-transposed weight (K_pad, N_pad): (tk, tn) at (k, j)
                    pl.BlockSpec((tk, tn), lambda i, j, k: (k, j)),
                ],
                out_specs=pl.BlockSpec((tb, tn), lambda i, j, k: (i, j)),
                scratch_shapes=scratch,
            ),
            compiler_params=pltpu.CompilerParams(
                dimension_semantics=("parallel", "parallel", "arbitrary"),
                vmem_limit_bytes=self.vmem_limit,
            ),
            cost_estimate=cost,
        )(x_p, self.w_kn)

        if (B_pad, self.N_pad) != (B, self.output_dim):
            return out_padded[:B, :self.output_dim]
        return out_padded


# ------------------------------- demo ------------------------------------------

if __name__ == "__main__":
    key = jax.random.PRNGKey(0)
    k1, k2, k3, k4, k5, k6 = jax.random.split(key, 6)

    # --- Module-scale shapes (batch=8, input_dim=32, output_dim=16), f32 ------
    batch, input_dim, output_dim = 8, 32, 16
    xi = jax.random.normal(k1, (batch, input_dim), dtype=jnp.float32)
    weight = jax.random.normal(k2, (output_dim, input_dim), dtype=jnp.float32) * 0.05
    model = WangSinkhornPallas(weight)
    out = jax.block_until_ready(model(xi))
    ref = xi @ weight.T
    assert out.shape == (batch, output_dim)
    assert jnp.allclose(out, ref, atol=1e-5, rtol=1e-5), "mismatch (small f32)"

    # --- Larger shape on the bf16 MXU path (single K step) --------------------
    B2, K2, N2 = 256, 1024, 384
    xi2 = jax.random.normal(k3, (B2, K2), dtype=jnp.float32)
    w2 = jax.random.normal(k4, (N2, K2), dtype=jnp.float32) * 0.02
    model2 = WangSinkhornPallas(w2, compute_dtype=jnp.bfloat16)
    out2 = jax.block_until_ready(model2(xi2))
    ref2 = jnp.dot(xi2.astype(jnp.bfloat16), w2.T.astype(jnp.bfloat16),
                   preferred_element_type=jnp.float32)
    assert out2.shape == (B2, N2)
    assert jnp.allclose(out2, ref2, atol=3e-2, rtol=3e-2), "mismatch (bf16)"

    # --- Multi-K-step accumulator path (grid_k > 1), f32 ----------------------
    B3, K3, N3 = 128, 2560, 256
    xi3 = jax.random.normal(k5, (B3, K3), dtype=jnp.float32)
    w3 = jax.random.normal(k6, (N3, K3), dtype=jnp.float32) * 0.02
    model3 = WangSinkhornPallas(w3, tk_cap=1024)   # forces grid_k > 1
    out3 = jax.block_until_ready(model3(xi3))
    ref3 = lax.dot_general(xi3, w3, (((1,), (1,)), ((), ())),
                           precision=lax.Precision.HIGHEST)
    assert out3.shape == (B3, N3)
    assert jnp.allclose(out3, ref3, atol=2e-2, rtol=2e-2), "mismatch (multi-K)"

    print("KERNEL_OK")
</pallas_src>

<mosaic_0001>
module attributes {stable_mosaic.version = 11 : i64} {
  func.func @_linear_kernel_single_k(%arg0: i32, %arg1: i32, %arg2: i32, %arg3: memref<8x128xf32, #tpu.memory_space<vmem>>, %arg4: memref<128x128xf32, #tpu.memory_space<vmem>>, %arg5: memref<8x128xf32, #tpu.memory_space<vmem>>) attributes {dimension_semantics = [#tpu.dimension_semantics<parallel>, #tpu.dimension_semantics<parallel>, #tpu.dimension_semantics<arbitrary>], iteration_bounds = array<i64: 1, 1, 1>, scalar_prefetch = 0 : i64, scratch_operands = 0 : i64, tpu.core_type = #tpu.core_type<tc>, window_params = [{transform_indices = @transform_0, window_bounds = array<i64: 8, 128>}, {transform_indices = @transform_1, window_bounds = array<i64: 128, 128>}, {transform_indices = @transform_2, window_bounds = array<i64: 8, 128>}]} {
    %c0 = arith.constant 0 : index
    %c0_0 = arith.constant 0 : index
    %0 = vector.load %arg3[%c0, %c0_0] : memref<8x128xf32, #tpu.memory_space<vmem>>, vector<8x128xf32>
    %c0_1 = arith.constant 0 : index
    %c0_2 = arith.constant 0 : index
    %1 = vector.load %arg4[%c0_1, %c0_2] : memref<128x128xf32, #tpu.memory_space<vmem>>, vector<128x128xf32>
    %cst = arith.constant dense<0.000000e+00> : vector<8x128xf32>
    %2 = tpu.matmul %0, %1, %cst {dimension_numbers = #tpu.dot_dimension_numbers<[1], [0], [0], [1], [0, 0, 1, 1], [], []>} : vector<8x128xf32>, vector<128x128xf32>, vector<8x128xf32> -> vector<8x128xf32>
    %c0_3 = arith.constant 0 : index
    %c0_4 = arith.constant 0 : index
    %3 = vector.load %arg5[%c0_3, %c0_4] : memref<8x128xf32, #tpu.memory_space<vmem>>, vector<8x128xf32>
    tpu.vector_store %arg5[%c0_3, %c0_4], %2 {strides = array<i32>} : memref<8x128xf32, #tpu.memory_space<vmem>>, vector<8x128xf32>,
    return
  }
  func.func @transform_0(%arg0: i32, %arg1: i32, %arg2: i32) -> (i32, i32) {
    %c0_i32 = arith.constant 0 : i32
    return %arg0, %arg2 : i32, i32
  }
  func.func @transform_1(%arg0: i32, %arg1: i32, %arg2: i32) -> (i32, i32) {
    %c0_i32 = arith.constant 0 : i32
    return %arg2, %arg1 : i32, i32
  }
  func.func @transform_2(%arg0: i32, %arg1: i32, %arg2: i32) -> (i32, i32) {
    %c0_i32 = arith.constant 0 : i32
    return %arg0, %arg1 : i32, i32
  }
}

</mosaic_0001>

<llo_original>
// kernel: tpu_custom_call.1
$region0: #{tpu_custom_call.1}
  #allocation0 [shape = 'u32[]', space=smem, size = 0x4, offset = 0x4, fixed_abs, tag = 'smem constant byte address 0x4 - core index']
  #allocation1 [shape = 'u32[144,128]{1,0:T(1,128)}', space=vmem, size = 0x12000, scoped, tag = 'internal scratch']
  %s0 = inlined_call_operand.hbm [shape: f32[8,128], index: 0, kind: input, shape index: {}]
  %s1 = inlined_call_operand.hbm [shape: f32[128,128], index: 1, kind: input, shape index: {}]
  %s2 = inlined_call_operand.hbm [shape: f32[8,128], index: 2, kind: output, shape index: {}]
  %s3 = sld [smem:[#allocation0]]
  $region26: #{tpu_custom_call.1} parent=0
    _
  %s5 = ssub.s32 1, %s3
  %s6 = scalar_select 0, %s5, %s3
  $region1: #{tpu_custom_call.1} parent=0
    #allocation2 [shape = 'u8[4096]{0}', space=vmem, size = 0x1000, scoped, tag = 'input window, operand 0, single buffered']
    #allocation3 [shape = 's32[1]{0}', space=sflag, size = 0x4, scoped, tag = 'scoped memory for tpu_custom_call.1']
    #allocation4 [shape = 's32[1]{0}', space=sflag, size = 0x4, scoped, tag = 'scoped memory for tpu_custom_call.1']
    #allocation5 [shape = 'u8[65536]{0}', space=vmem, size = 0x10000, scoped, tag = 'input window, operand 1, single buffered']
    #allocation6 [shape = 's32[1]{0}', space=sflag, size = 0x4, scoped, tag = 'scoped memory for tpu_custom_call.1']
    #allocation7 [shape = 'u8[4096]{0}', space=vmem, size = 0x1000, scoped, tag = 'output window, operand 0, single buffered']
    %7 = vsyncpa [#allocation3], 0
    %8 = vsyncpa [#allocation6], 0
    %9 = vsyncpa [#allocation4], 0
    // Predicated region
    $region2: #{tpu_custom_call.1} parent=1 // pred_check
      _
    $region3: #{tpu_custom_call.1} parent=1 // pred_check_branch
      %11 = sbr.rel (0) target = $region5
    $region4: #{tpu_custom_call.1} parent=1 // pred_region
      %s13 = ssub.s32 128, 128
      %14 = vsyncadd [#allocation3], %s13
      %s16 = sshll.u32 [#allocation2], 4
      %s17 = int_to_ptr.vmem [resolvable:$true] %s16
      %19 = dma.hbm_to_vmem [thread:$0]  %s0, 128, %s17, [#allocation3]
    $region5: #{tpu_custom_call.1} parent=1 // pred_fallthru
      _
    // Predicated region
    $region6: #{tpu_custom_call.1} parent=1 // pred_check
      _
    $region7: #{tpu_custom_call.1} parent=1 // pred_check_branch
      %21 = sbr.rel (0) target = $region9
    $region8: #{tpu_custom_call.1} parent=1 // pred_region
      %s23 = ssub.s32 2048, 2048
      %24 = vsyncadd [#allocation6], %s23
      %s25 = sshll.u32 [#allocation5], 4
      %s26 = int_to_ptr.vmem [resolvable:$true] %s25
      %31 = dma.hbm_to_vmem [thread:$0]  %s1, 2048, %s26, [#allocation6], 128, 128, 8
    $region9: #{tpu_custom_call.1} parent=1 // pred_fallthru
      _
    // Predicated region
    $region10: #{tpu_custom_call.1} parent=1 // pred_check
      _
    $region11: #{tpu_custom_call.1} parent=1 // pred_check_branch
      %33 = sbr.rel (0) target = $region13
    $region12: #{tpu_custom_call.1} parent=1 // pred_region
      %34 = dma.done [#allocation3], 128
    $region13: #{tpu_custom_call.1} parent=1 // pred_fallthru
      _
    // Predicated region
    $region14: #{tpu_custom_call.1} parent=1 // pred_check
      _
    $region15: #{tpu_custom_call.1} parent=1 // pred_check_branch
      %36 = sbr.rel (0) target = $region17
    $region16: #{tpu_custom_call.1} parent=1 // pred_region
      %37 = dma.done [#allocation6], 2048
    $region17: #{tpu_custom_call.1} parent=1 // pred_fallthru
      _
    %v38 = vld [vmem:[#allocation2] sm:$0xff]
    %v39 = vld [vmem:[#allocation5] sm:$0xff]
    %v40 = vld [vmem:[#allocation5 + $0x8] sm:$0xff]
    %v41 = vld [vmem:[#allocation5 + $0x10] sm:$0xff]
    %v42 = vld [vmem:[#allocation5 + $0x18] sm:$0xff]
    %v43 = vld [vmem:[#allocation5 + $0x20] sm:$0xff]
    %v44 = vld [vmem:[#allocation5 + $0x28] sm:$0xff]
    %v45 = vld [vmem:[#allocation5 + $0x30] sm:$0xff]
    %v46 = vld [vmem:[#allocation5 + $0x38] sm:$0xff]
    %v47 = vld [vmem:[#allocation5 + $0x40] sm:$0xff]
    %v48 = vld [vmem:[#allocation5 + $0x48] sm:$0xff]
    %v49 = vld [vmem:[#allocation5 + $0x50] sm:$0xff]
    %v50 = vld [vmem:[#allocation5 + $0x58] sm:$0xff]
    %v51 = vld [vmem:[#allocation5 + $0x60] sm:$0xff]
    %v52 = vld [vmem:[#allocation5 + $0x68] sm:$0xff]
    %v53 = vld [vmem:[#allocation5 + $0x70] sm:$0xff]
    %v54 = vld [vmem:[#allocation5 + $0x78] sm:$0xff]
    %55 = vmatprep.subr.mxu0 0.0
    %56 = vmatpush1.msra.mxu0 %v39
    %57 = vmatprep.subr.mxu0 0.0
    %58 = vmatpush1.msra.mxu0 %v40
    %59 = vmatprep.subr.mxu0 0.0
    %60 = vmatpush1.msra.mxu0 %v41
    %61 = vmatprep.subr.mxu0 0.0
    %62 = vmatpush1.msra.mxu0 %v42
    %63 = vmatprep.subr.mxu0 0.0
    %64 = vmatpush1.msra.mxu0 %v43
    %65 = vmatprep.subr.mxu0 0.0
    %66 = vmatpush1.msra.mxu0 %v44
    %67 = vmatprep.subr.mxu0 0.0
    %68 = vmatpush1.msra.mxu0 %v45
    %69 = vmatprep.subr.mxu0 0.0
    %70 = vmatpush1.msra.mxu0 %v46
    %71 = vmatprep.subr.mxu0 0.0
    %72 = vmatpush1.msra.mxu0 %v47
    %73 = vmatprep.subr.mxu0 0.0
    %74 = vmatpush1.msra.mxu0 %v48
    %75 = vmatprep.subr.mxu0 0.0
    %76 = vmatpush1.msra.mxu0 %v49
    %77 = vmatprep.subr.mxu0 0.0
    %78 = vmatpush1.msra.mxu0 %v50
    %79 = vmatprep.subr.mxu0 0.0
    %80 = vmatpush1.msra.mxu0 %v51
    %81 = vmatprep.subr.mxu0 0.0
    %82 = vmatpush1.msra.mxu0 %v52
    %83 = vmatprep.subr.mxu0 0.0
    %84 = vmatpush1.msra.mxu0 %v53
    %85 = vmatprep.subr.mxu0 0.0
    %86 = vmatpush1.msra.mxu0 %v54
    %87 = vmatprep.subr.mxu0 0.0
    %88 = vmatpush1.msra.mxu0 0.0
    %89 = vmatprep.subr.mxu0 0.0
    %90 = vmatpush1.msra.mxu0 0.0
    %91 = vmatprep.subr.mxu0 0.0
    %92 = vmatpush1.msra.mxu0 0.0
    %93 = vmatprep.subr.mxu0 0.0
    %94 = vmatpush1.msra.mxu0 0.0
    %95 = vmatprep.subr.mxu0 0.0
    %96 = vmatpush1.msra.mxu0 0.0
    %97 = vmatprep.subr.mxu0 0.0
    %98 = vmatpush1.msra.mxu0 0.0
    %99 = vmatprep.subr.mxu0 0.0
    %100 = vmatpush1.msra.mxu0 0.0
    %101 = vmatprep.subr.mxu0 0.0
    %102 = vmatpush1.msra.mxu0 0.0
    %103 = vmatprep.subr.mxu0 0.0
    %104 = vmatpush1.msra.mxu0 0.0
    %105 = vmatprep.subr.mxu0 0.0
    %106 = vmatpush1.msra.mxu0 0.0
    %107 = vmatprep.subr.mxu0 0.0
    %108 = vmatpush1.msra.mxu0 0.0
    %109 = vmatprep.subr.mxu0 0.0
    %110 = vmatpush1.msra.mxu0 0.0
    %111 = vmatprep.subr.mxu0 0.0
    %112 = vmatpush1.msra.mxu0 0.0
    %113 = vmatprep.subr.mxu0 0.0
    %114 = vmatpush1.msra.mxu0 0.0
    %115 = vmatprep.subr.mxu0 0.0
    %116 = vmatpush1.msra.mxu0 0.0
    %117 = vmatprep.subr.mxu0 0.0
    %118 = vmatpush1.msra.mxu0 0.0
    %119 = vmatprep.mubr.f32.mxu0 0.0
    %120 = vmatmul.mubr.f32.gmra.mrb[0].mxu0 %v38
    %v121 = vpop.f32.mrb[0].mxu0
    %v122 = vadd.f32 0.0, %v121
    %v123 = vpop.f32.mrb[0].mxu0
    %124 = vdwg.mxu0
    %125 = vst [vmem:[#allocation7] sm:$0xff] %v122
    // Predicated region
    $region18: #{tpu_custom_call.1} parent=1 // pred_check
      _
    $region19: #{tpu_custom_call.1} parent=1 // pred_check_branch
      %127 = sbr.rel (0) target = $region21
    $region20: #{tpu_custom_call.1} parent=1 // pred_region
      %s129 = ssub.s32 128, 128
      %130 = vsyncadd [#allocation4], %s129
      %s132 = sshll.u32 [#allocation7], 4
      %s133 = int_to_ptr.vmem [resolvable:$true] %s132
      %135 = dma.vmem_to_hbm [thread:$0]  %s133, 128, %s2, [#allocation4]
    $region21: #{tpu_custom_call.1} parent=1 // pred_fallthru
      _
    // Predicated region
    $region22: #{tpu_custom_call.1} parent=1 // pred_check
      _
    $region23: #{tpu_custom_call.1} parent=1 // pred_check_branch
      %137 = sbr.rel (0) target = $region25
    $region24: #{tpu_custom_call.1} parent=1 // pred_region
      %138 = dma.done [#allocation4], 128
    $region25: #{tpu_custom_call.1} parent=1 // pred_fallthru
      _
    %139 = vsyncpa [#allocation3], 1
    %140 = vsyncpa [#allocation6], 1
    %141 = vsyncpa [#allocation4], 1

</llo_original>
